<compile_context>
chip_gen: v5e
topology: v5e:2x2
jax: 0.10.0
libtpu: 0.0.40
codegen_flags: <defaults>
</compile_context>

<pallas_src>
import functools
import math

import numpy as np
import jax
import jax.numpy as jnp
from jax import lax
from jax.experimental import pallas as pl
from jax.experimental.pallas import tpu as pltpu

_SUBLANES = 8  # f32 sublane tile


def _pad_to_multiple(a, axis, multiple=_SUBLANES):
    n = a.shape[axis]
    n_pad = (-(-n // multiple)) * multiple
    if n_pad == n:
        return a
    pad = [(0, 0)] * a.ndim
    pad[axis] = (0, n_pad - n)
    return jnp.pad(a, pad)


# --------------------- packed-gate math (gate order: f, u, o, g) --------------
def _gate_update(z, c):
    """z:(R,4H) pre-activations packed (f,u,o,g); c:(R,H) -> (h_new, c_new)."""
    H = c.shape[-1]
    s = jax.nn.sigmoid(z[:, : 3 * H])        # one EUP pass over the sigmoid slab
    f = s[:, 0 * H: 1 * H]                   # forget gate
    u = s[:, 1 * H: 2 * H]                   # update (input) gate
    o = s[:, 2 * H: 3 * H]                   # output gate
    g = jnp.tanh(z[:, 3 * H: 4 * H])         # cell candidates (one tanh pass)
    c_new = f * c + u * g
    h_new = o * jnp.tanh(c_new)
    return h_new, c_new


# --------------------------- single-step kernel -------------------------------
def _lstm_cell_kernel(x_ref, h_ref, c_ref, wx_ref, wh_ref, b_ref,
                      h_out_ref, c_out_ref):
    z = (jnp.dot(x_ref[...], wx_ref[...], preferred_element_type=jnp.float32)
         + jnp.dot(h_ref[...], wh_ref[...], preferred_element_type=jnp.float32)
         + b_ref[...])
    h_new, c_new = _gate_update(z, c_ref[...])
    h_out_ref[...] = h_new
    c_out_ref[...] = c_new


def _lstm_cell_pallas(x2d, h2d, c2d, wx, wh, b):
    rows, H = h2d.shape
    vmem = pltpu.MemorySpace.VMEM
    out_shape = (jax.ShapeDtypeStruct((rows, H), jnp.float32),
                 jax.ShapeDtypeStruct((rows, H), jnp.float32))
    # NOTE: aliases depend on this exact ordering: inputs 1=h, 2=c -> outputs
    # 0=h_new, 1=c_new.  Do not reorder args/outputs without updating it.
    return pl.pallas_call(
        _lstm_cell_kernel,
        out_shape=out_shape,
        in_specs=[pl.BlockSpec(memory_space=vmem)] * 6,
        out_specs=(pl.BlockSpec(memory_space=vmem),
                   pl.BlockSpec(memory_space=vmem)),
        input_output_aliases={1: 0, 2: 1},
    )(x2d, h2d, c2d, wx, wh, b)


# --------------------------- whole-sequence kernel ----------------------------
def _lstm_seq_kernel(zx_ref, h0_ref, c0_ref, wh_ref,
                     hseq_ref, hfin_ref, cfin_ref, h_sc, c_sc, *, t_blk):
    blk = pl.program_id(0)

    @pl.when(blk == 0)
    def _():
        h_sc[...] = h0_ref[...]
        c_sc[...] = c0_ref[...]

    wh = wh_ref[...]  # resident weights (constant index_map), loaded once

    def step(i, carry):
        # Only the recurrent half of the projection stays in the serial loop.
        z = zx_ref[i] + jnp.dot(h_sc[...], wh, preferred_element_type=jnp.float32)
        h_new, c_new = _gate_update(z, c_sc[...])
        h_sc[...] = h_new
        c_sc[...] = c_new
        hseq_ref[i] = h_new   # VMEM slab write; HBM writeback once per block
        return carry

    lax.fori_loop(0, t_blk, step, 0, unroll=True)

    # Final-state outputs: resident blocks, write only on the last time-block.
    @pl.when(blk == pl.num_programs(0) - 1)
    def _():
        hfin_ref[...] = h_sc[...]
        cfin_ref[...] = c_sc[...]


@functools.partial(jax.jit, static_argnames=("t_block",))
def unrolled_lstm_sequence_forward(packed_params, x_seq, h0, c0, *, t_block=None):
    """Run T timesteps of the LSTM cell inside ONE pallas_call.

    x_seq : (T, B, I) f32;  h0, c0 : (B, H) f32
    returns (h_seq (T,B,H), h_final (B,H), c_final (B,H))
    """
    wx, wh, b = packed_params
    T, B, I = x_seq.shape
    H = h0.shape[-1]

    if t_block is None:
        t_block = T
    assert T % t_block == 0, "t_block must divide T (pad the sequence if needed)"
    num_blocks = T // t_block

    # Fill the sublanes: pad batch rows up to the f32 sublane tile (8).
    xp = _pad_to_multiple(x_seq.astype(jnp.float32), axis=1)
    hp = _pad_to_multiple(h0.astype(jnp.float32), axis=0)
    cp = _pad_to_multiple(c0.astype(jnp.float32), axis=0)
    BP = xp.shape[1]

    # Hoist the input projection out of the recurrence: one MXU-friendly matmul.
    zx = (xp.reshape(T * BP, I) @ wx + b).reshape(T, BP, 4 * H)

    out_shape = (jax.ShapeDtypeStruct((T, BP, H), jnp.float32),
                 jax.ShapeDtypeStruct((BP, H), jnp.float32),
                 jax.ShapeDtypeStruct((BP, H), jnp.float32))

    h_seq, h_fin, c_fin = pl.pallas_call(
        functools.partial(_lstm_seq_kernel, t_blk=t_block),
        out_shape=out_shape,
        grid_spec=pltpu.PrefetchScalarGridSpec(
            num_scalar_prefetch=0,
            grid=(num_blocks,),
            in_specs=[
                pl.BlockSpec((t_block, BP, 4 * H), lambda t: (t, 0, 0)),  # z_x
                pl.BlockSpec((BP, H), lambda t: (0, 0)),                  # h0
                pl.BlockSpec((BP, H), lambda t: (0, 0)),                  # c0
                pl.BlockSpec((H, 4 * H), lambda t: (0, 0)),               # Wh
            ],
            out_specs=[
                pl.BlockSpec((t_block, BP, H), lambda t: (t, 0, 0)),      # h_seq
                pl.BlockSpec((BP, H), lambda t: (0, 0)),                  # h final
                pl.BlockSpec((BP, H), lambda t: (0, 0)),                  # c final
            ],
            scratch_shapes=[pltpu.VMEM((BP, H), jnp.float32),             # h carry
                            pltpu.VMEM((BP, H), jnp.float32)],            # c carry
        ),
        compiler_params=pltpu.CompilerParams(
            dimension_semantics=("arbitrary",)),   # recurrent axis: keep serial
    )(zx, hp, cp, wh)

    return h_seq[:, :B, :], h_fin[:B], c_fin[:B]


# --------------------------- params -------------------------------------------
def init_unrolled_lstm_params(key, input_size, hidden_size):
    """Deterministic init mirroring nn.init.uniform_(-sqrt_k, sqrt_k)."""
    sqrt_k = math.sqrt(1.0 / hidden_size)
    keys = jax.random.split(key, 8)
    in_features = input_size + hidden_size

    def mk(kw, kb):
        # PyTorch Linear weight is (out, in); stored transposed (in, out) for x @ W.
        w = jax.random.uniform(kw, (in_features, hidden_size),
                               minval=-sqrt_k, maxval=sqrt_k, dtype=jnp.float32)
        b = jax.random.uniform(kb, (1, hidden_size),
                               minval=-sqrt_k, maxval=sqrt_k, dtype=jnp.float32)
        return w, b

    forget = mk(keys[0], keys[1])
    update = mk(keys[2], keys[3])
    cand = mk(keys[4], keys[5])
    output = mk(keys[6], keys[7])
    return forget, update, cand, output


def pack_lstm_params(params, input_size):
    """One-time fuse of the 4 gate Linears.

    Packing order is (f, u, o, g): the three SIGMOID gates occupy one
    contiguous (.., 3H) slab, the tanh candidates the last H columns.
    """
    (wf, bf), (wu, bu), (wc, bc), (wo, bo) = params
    w_fused = jnp.concatenate([wf, wu, wo, wc], axis=1)    # (I+H, 4H)
    b_fused = jnp.concatenate([bf, bu, bo, bc], axis=1)    # (1, 4H)
    wx = w_fused[:input_size, :]                           # (I, 4H)
    wh = w_fused[input_size:, :]                           # (H, 4H)
    return wx, wh, b_fused


# --------------------------- module-equivalent forward ------------------------
@functools.partial(jax.jit, static_argnames=("hidden_size", "batch_first"))
def unrolled_lstm_cell_forward(packed_params, x, state, *, hidden_size,
                               batch_first=True):
    """Mirrors UnrolledLSTMCell.forward (single timestep).

    For multi-step use, route through unrolled_lstm_sequence_forward instead of
    Python-unrolling this call (avoids per-step dispatch + weight re-DMA).
    """
    wx, wh, b = packed_params
    hidden, cell = state
    if batch_first:
        hidden = jnp.swapaxes(hidden, 0, 1)
        cell = jnp.swapaxes(cell, 0, 1)

    lead = x.shape[:-1]
    rows = int(np.prod(lead)) if lead else 1
    input_size = x.shape[-1]

    x2d = _pad_to_multiple(x.reshape(rows, input_size).astype(jnp.float32), 0)
    h2d = _pad_to_multiple(hidden.reshape(rows, hidden_size).astype(jnp.float32), 0)
    c2d = _pad_to_multiple(cell.reshape(rows, hidden_size).astype(jnp.float32), 0)

    h_new, c_new = _lstm_cell_pallas(x2d, h2d, c2d, wx, wh, b)
    h_new = h_new[:rows]
    c_new = c_new[:rows]

    updated_hidden = h_new.reshape(lead + (hidden_size,))
    updated_cell = c_new.reshape(lead + (hidden_size,))
    if batch_first:
        updated_hidden = jnp.swapaxes(updated_hidden, 0, 1)
        updated_cell = jnp.swapaxes(updated_cell, 0, 1)
    return updated_hidden, (updated_hidden, updated_cell)


# --------------------------- pure-JAX references ------------------------------
def _reference_forward(params, x, state, *, hidden_size, batch_first=True):
    hidden, cell = state
    if batch_first:
        hidden = jnp.swapaxes(hidden, 0, 1)
        cell = jnp.swapaxes(cell, 0, 1)
    xh = jnp.concatenate([x, hidden], axis=-1)
    (wf, bf), (wu, bu), (wc, bc), (wo, bo) = params
    f = jax.nn.sigmoid(xh @ wf + bf[0])
    u = jax.nn.sigmoid(xh @ wu + bu[0])
    g = jnp.tanh(xh @ wc + bc[0])
    o = jax.nn.sigmoid(xh @ wo + bo[0])
    c_new = f * cell + u * g
    h_new = o * jnp.tanh(c_new)
    if batch_first:
        h_new = jnp.swapaxes(h_new, 0, 1)
        c_new = jnp.swapaxes(c_new, 0, 1)
    return h_new, (h_new, c_new)


def _reference_sequence(params, x_seq, h0, c0):
    (wf, bf), (wu, bu), (wc, bc), (wo, bo) = params
    h, c = h0, c0
    hs = []
    for t in range(x_seq.shape[0]):
        xh = jnp.concatenate([x_seq[t], h], axis=-1)
        f = jax.nn.sigmoid(xh @ wf + bf[0])
        u = jax.nn.sigmoid(xh @ wu + bu[0])
        g = jnp.tanh(xh @ wc + bc[0])
        o = jax.nn.sigmoid(xh @ wo + bo[0])
        c = f * c + u * g
        h = o * jnp.tanh(c)
        hs.append(h)
    return jnp.stack(hs, axis=0), h, c


# ------------------------------------------------------------------------------
if __name__ == "__main__":
    input_size = 16
    hidden_size = 32
    batch = 2
    seq_len = 8

    key = jax.random.PRNGKey(0)
    k_params, k_x, k_h, k_c, k_xs = jax.random.split(key, 5)

    params = init_unrolled_lstm_params(k_params, input_size, hidden_size)
    packed = pack_lstm_params(params, input_size)   # fused once, not per call

    # ---- single-step cell (exactly the PyTorch module's forward) ----
    # batch_first storage: hidden/cell are (batch, 1, hidden); x matches the
    # transposed hidden leading dims -> (1, batch, input_size).
    x = jax.random.normal(k_x, (1, batch, input_size), dtype=jnp.float32)
    hidden0 = jax.random.normal(k_h, (batch, 1, hidden_size), dtype=jnp.float32)
    cell0 = jax.random.normal(k_c, (batch, 1, hidden_size), dtype=jnp.float32)

    out_h, (new_h, new_c) = unrolled_lstm_cell_forward(
        packed, x, (hidden0, cell0), hidden_size=hidden_size, batch_first=True)
    jax.block_until_ready((out_h, new_h, new_c))

    ref_h, (_, ref_c) = _reference_forward(
        params, x, (hidden0, cell0), hidden_size=hidden_size, batch_first=True)

    assert out_h.shape == (batch, 1, hidden_size)
    assert new_c.shape == (batch, 1, hidden_size)
    np.testing.assert_allclose(np.asarray(out_h), np.asarray(ref_h),
                               atol=1e-5, rtol=1e-5)
    np.testing.assert_allclose(np.asarray(new_c), np.asarray(ref_c),
                               atol=1e-5, rtol=1e-5)

    # ---- fused sequence kernel: whole time loop inside one pallas_call ----
    x_seq = jax.random.normal(k_xs, (seq_len, batch, input_size), dtype=jnp.float32)
    h0 = hidden0[:, 0, :]            # (B, H)
    c0 = cell0[:, 0, :]

    h_seq, h_T, c_T = unrolled_lstm_sequence_forward(packed, x_seq, h0, c0)
    jax.block_until_ready((h_seq, h_T, c_T))

    ref_hseq, ref_hT, ref_cT = _reference_sequence(params, x_seq, h0, c0)
    np.testing.assert_allclose(np.asarray(h_seq), np.asarray(ref_hseq),
                               atol=1e-5, rtol=1e-5)
    np.testing.assert_allclose(np.asarray(h_T), np.asarray(ref_hT),
                               atol=1e-5, rtol=1e-5)
    np.testing.assert_allclose(np.asarray(c_T), np.asarray(ref_cT),
                               atol=1e-5, rtol=1e-5)

    print("KERNEL_OK")
</pallas_src>

<mosaic_0001>
module attributes {stable_mosaic.version = 11 : i64} {
  func.func @_lstm_cell_kernel(%arg0: memref<8x16xf32, #tpu.memory_space<vmem>>, %arg1: memref<8x32xf32, #tpu.memory_space<vmem>>, %arg2: memref<8x32xf32, #tpu.memory_space<vmem>>, %arg3: memref<16x128xf32, #tpu.memory_space<vmem>>, %arg4: memref<32x128xf32, #tpu.memory_space<vmem>>, %arg5: memref<1x128xf32, #tpu.memory_space<vmem>>, %arg6: memref<8x32xf32, #tpu.memory_space<vmem>>, %arg7: memref<8x32xf32, #tpu.memory_space<vmem>>) attributes {dimension_semantics = [], scalar_prefetch = 0 : i64, scratch_operands = 0 : i64, tpu.core_type = #tpu.core_type<tc>} {
    %c0 = arith.constant 0 : index
    %c0_0 = arith.constant 0 : index
    %0 = vector.load %arg0[%c0, %c0_0] : memref<8x16xf32, #tpu.memory_space<vmem>>, vector<8x16xf32>
    %c0_1 = arith.constant 0 : index
    %c0_2 = arith.constant 0 : index
    %1 = vector.load %arg3[%c0_1, %c0_2] : memref<16x128xf32, #tpu.memory_space<vmem>>, vector<16x128xf32>
    %cst = arith.constant dense<0.000000e+00> : vector<8x128xf32>
    %2 = tpu.matmul %0, %1, %cst {dimension_numbers = #tpu.dot_dimension_numbers<[1], [0], [0], [1], [0, 0, 1, 1], [], []>} : vector<8x16xf32>, vector<16x128xf32>, vector<8x128xf32> -> vector<8x128xf32>
    %c0_3 = arith.constant 0 : index
    %c0_4 = arith.constant 0 : index
    %3 = vector.load %arg1[%c0_3, %c0_4] : memref<8x32xf32, #tpu.memory_space<vmem>>, vector<8x32xf32>
    %c0_5 = arith.constant 0 : index
    %c0_6 = arith.constant 0 : index
    %4 = vector.load %arg4[%c0_5, %c0_6] : memref<32x128xf32, #tpu.memory_space<vmem>>, vector<32x128xf32>
    %cst_7 = arith.constant dense<0.000000e+00> : vector<8x128xf32>
    %5 = tpu.matmul %3, %4, %cst_7 {dimension_numbers = #tpu.dot_dimension_numbers<[1], [0], [0], [1], [0, 0, 1, 1], [], []>} : vector<8x32xf32>, vector<32x128xf32>, vector<8x128xf32> -> vector<8x128xf32>
    %6 = arith.addf %2, %5 : vector<8x128xf32>
    %c0_8 = arith.constant 0 : index
    %c0_9 = arith.constant 0 : index
    %7 = vector.load %arg5[%c0_8, %c0_9] : memref<1x128xf32, #tpu.memory_space<vmem>>, vector<1x128xf32>
    %8 = vector.broadcast %7 : vector<1x128xf32> to vector<8x128xf32>
    %9 = arith.addf %6, %8 : vector<8x128xf32>
    %c0_10 = arith.constant 0 : index
    %c0_11 = arith.constant 0 : index
    %10 = vector.load %arg2[%c0_10, %c0_11] : memref<8x32xf32, #tpu.memory_space<vmem>>, vector<8x32xf32>
    %11 = vector.extract_strided_slice %9 {offsets = [0, 0], sizes = [8, 96], strides = [1, 1]} : vector<8x128xf32> to vector<8x96xf32>
    %12 = arith.negf %11 : vector<8x96xf32>
    %13 = math.exp %12 : vector<8x96xf32>
    %cst_12 = arith.constant 1.000000e+00 : f32
    %14 = vector.broadcast %cst_12 : f32 to vector<8x96xf32>
    %15 = arith.addf %14, %13 : vector<8x96xf32>
    %16 = arith.divf %14, %15 : vector<8x96xf32>
    %17 = vector.extract_strided_slice %16 {offsets = [0, 0], sizes = [8, 32], strides = [1, 1]} : vector<8x96xf32> to vector<8x32xf32>
    %18 = vector.extract_strided_slice %16 {offsets = [0, 32], sizes = [8, 32], strides = [1, 1]} : vector<8x96xf32> to vector<8x32xf32>
    %19 = vector.extract_strided_slice %16 {offsets = [0, 64], sizes = [8, 32], strides = [1, 1]} : vector<8x96xf32> to vector<8x32xf32>
    %20 = vector.extract_strided_slice %9 {offsets = [0, 96], sizes = [8, 32], strides = [1, 1]} : vector<8x128xf32> to vector<8x32xf32>
    %21 = math.tanh %20 : vector<8x32xf32>
    %22 = arith.mulf %17, %10 : vector<8x32xf32>
    %23 = arith.mulf %18, %21 : vector<8x32xf32>
    %24 = arith.addf %22, %23 : vector<8x32xf32>
    %25 = math.tanh %24 : vector<8x32xf32>
    %26 = arith.mulf %19, %25 : vector<8x32xf32>
    %c0_13 = arith.constant 0 : index
    %c0_14 = arith.constant 0 : index
    %27 = vector.load %arg6[%c0_13, %c0_14] : memref<8x32xf32, #tpu.memory_space<vmem>>, vector<8x32xf32>
    tpu.vector_store %arg6[%c0_13, %c0_14], %26 {strides = array<i32>} : memref<8x32xf32, #tpu.memory_space<vmem>>, vector<8x32xf32>,
    %c0_15 = arith.constant 0 : index
    %c0_16 = arith.constant 0 : index
    %28 = vector.load %arg7[%c0_15, %c0_16] : memref<8x32xf32, #tpu.memory_space<vmem>>, vector<8x32xf32>
    tpu.vector_store %arg7[%c0_15, %c0_16], %24 {strides = array<i32>} : memref<8x32xf32, #tpu.memory_space<vmem>>, vector<8x32xf32>,
    return
  }
}

</mosaic_0001>

<llo_original>
// kernel: unrolled_lstm_cell_forward.1
$region0: #{unrolled_lstm_cell_forward.1}
  #allocation0 [shape = 'u32[]', space=smem, size = 0x4, offset = 0x4, fixed_abs, tag = 'smem constant byte address 0x4 - core index']
  #allocation1 [shape = 'u32[72,128]{1,0:T(1,128)}', space=vmem, size = 0x9000, scoped, tag = 'internal scratch']
  %s0 = inlined_call_operand.vmem [shape: f32[8,16], index: 0, kind: input, shape index: {}]
  %s1 = inlined_call_operand.vmem [shape: f32[8,32], index: 1, kind: input, shape index: {}, may-alias: {1,6}]
  %s2 = inlined_call_operand.vmem [shape: f32[8,32], index: 2, kind: input, shape index: {}, may-alias: {2,7}]
  %s3 = inlined_call_operand.vmem [shape: f32[16,128], index: 3, kind: input, shape index: {}]
  %s4 = inlined_call_operand.hbm [shape: f32[32,128], index: 4, kind: input, shape index: {}]
  %s5 = inlined_call_operand.vmem [shape: f32[1,128], index: 5, kind: input, shape index: {}]
  %s6 = inlined_call_operand.vmem [shape: f32[8,32], index: 6, kind: output, shape index: {0}, may-alias: {1,6}]
  %s7 = inlined_call_operand.vmem [shape: f32[8,32], index: 7, kind: output, shape index: {1}, may-alias: {2,7}]
  %8 = xla_tuple %s6, %s7
  %s9 = sld [smem:[#allocation0]]
  $region46: #{unrolled_lstm_cell_forward.1} parent=0
    _
  %s11 = ssub.s32 1, %s9
  %s12 = scalar_select 0, %s11, %s9
  $region1: #{unrolled_lstm_cell_forward.1} parent=0
    #allocation2 [shape = 'u8[16384]{0}', space=vmem, size = 0x4000, scoped, tag = 'input window, operand 4, single buffered']
    #allocation3 [shape = 's32[1]{0}', space=sflag, size = 0x4, scoped, tag = 'scoped memory for unrolled_lstm_cell_forward.1']
    %13 = vsyncpa [#allocation3], 0
    // Predicated region
    $region2: #{unrolled_lstm_cell_forward.1} parent=1 // pred_check
      _
    $region3: #{unrolled_lstm_cell_forward.1} parent=1 // pred_check_branch
      %15 = sbr.rel (0) target = $region5
    $region4: #{unrolled_lstm_cell_forward.1} parent=1 // pred_region
      _
    $region5: #{unrolled_lstm_cell_forward.1} parent=1 // pred_fallthru
      _
    // Predicated region
    $region6: #{unrolled_lstm_cell_forward.1} parent=1 // pred_check
      _
    $region7: #{unrolled_lstm_cell_forward.1} parent=1 // pred_check_branch
      %17 = sbr.rel (0) target = $region9
    $region8: #{unrolled_lstm_cell_forward.1} parent=1 // pred_region
      _
    $region9: #{unrolled_lstm_cell_forward.1} parent=1 // pred_fallthru
      _
    // Predicated region
    $region10: #{unrolled_lstm_cell_forward.1} parent=1 // pred_check
      _
    $region11: #{unrolled_lstm_cell_forward.1} parent=1 // pred_check_branch
      %19 = sbr.rel (0) target = $region13
    $region12: #{unrolled_lstm_cell_forward.1} parent=1 // pred_region
      _
    $region13: #{unrolled_lstm_cell_forward.1} parent=1 // pred_fallthru
      _
    // Predicated region
    $region14: #{unrolled_lstm_cell_forward.1} parent=1 // pred_check
      _
    $region15: #{unrolled_lstm_cell_forward.1} parent=1 // pred_check_branch
      %21 = sbr.rel (0) target = $region17
    $region16: #{unrolled_lstm_cell_forward.1} parent=1 // pred_region
      _
    $region17: #{unrolled_lstm_cell_forward.1} parent=1 // pred_fallthru
      _
    // Predicated region
    $region18: #{unrolled_lstm_cell_forward.1} parent=1 // pred_check
      _
    $region19: #{unrolled_lstm_cell_forward.1} parent=1 // pred_check_branch
      %23 = sbr.rel (0) target = $region21
    $region20: #{unrolled_lstm_cell_forward.1} parent=1 // pred_region
      %25 = vsyncadd [#allocation3], 0
      %s26 = sshll.u32 %s4, 4
      %s27 = int_to_ptr.hbm [resolvable:$true] %s26
      %s28 = sshll.u32 [#allocation2], 4
      %s29 = int_to_ptr.vmem [resolvable:$true] %s28
      %34 = dma.hbm_to_vmem [thread:$0]  %s27, 512, %s29, [#allocation3], 128, 128, 8
    $region21: #{unrolled_lstm_cell_forward.1} parent=1 // pred_fallthru
      _
    // Predicated region
    $region22: #{unrolled_lstm_cell_forward.1} parent=1 // pred_check
      _
    $region23: #{unrolled_lstm_cell_forward.1} parent=1 // pred_check_branch
      %36 = sbr.rel (0) target = $region25
    $region24: #{unrolled_lstm_cell_forward.1} parent=1 // pred_region
      _
    $region25: #{unrolled_lstm_cell_forward.1} parent=1 // pred_fallthru
      _
    // Predicated region
    $region26: #{unrolled_lstm_cell_forward.1} parent=1 // pred_check
      _
    $region27: #{unrolled_lstm_cell_forward.1} parent=1 // pred_check_branch
      %38 = sbr.rel (0) target = $region29
    $region28: #{unrolled_lstm_cell_forward.1} parent=1 // pred_region
      %40 = dma.done [#allocation3], 512
    $region29: #{unrolled_lstm_cell_forward.1} parent=1 // pred_fallthru
      _
    %v41 = vld [vmem:[%s0] sm:$0xff]
    %v42 = vld [vmem:[%s3] sm:$0xff]
    %v43 = vld [vmem:[%s3 + $0x8] sm:$0xff]
    %v44 = vld [vmem:[%s1] sm:$0xff]
    %v45 = vld [vmem:[#allocation2] sm:$0xff]
    %v46 = vld [vmem:[#allocation2 + $0x8] sm:$0xff]
    %v47 = vld [vmem:[#allocation2 + $0x10] sm:$0xff]
    %v48 = vld [vmem:[#allocation2 + $0x18] sm:$0xff]
    %vm49 = vcmask 261120
    %v51 = vsel %vm49, %v44, 0
    %53 = vmatpush.msra.mxu0 0.0
    %54 = vmatpush.msra.mxu0 0.0
    %55 = vmatpush.msra.mxu0 0.0
    %56 = vmatpush.msra.mxu0 0.0
    %57 = vmatpush.msra.mxu0 0.0
    %58 = vmatpush.msra.mxu0 0.0
    %59 = vmatpush.msra.mxu0 0.0
    %60 = vmatpush.msra.mxu0 0.0
    %61 = vmatpush.msra.mxu0 0.0
    %62 = vmatpush.msra.mxu0 0.0
    %63 = vmatpush.msra.mxu0 0.0
    %64 = vmatpush.msra.mxu0 0.0
    %65 = vmatpush.msra.mxu0 %v48
    %66 = vmatpush.msra.mxu0 %v47
    %67 = vmatpush.msra.mxu0 %v46
    %68 = vmatpush.msra.mxu0 %v45
    %69 = vmatmul.f32.gmra.mxu0 %v51
    %v70 = vpop.f32.mrf.mxu0
    %v71 = vadd.f32 0.0, %v70
    %72 = vdwg.mxu0
    %vm73 = vcmask 130048
    %v75 = vsel %vm73, %v41, 0
    %77 = vmatpush.msra.mxu0 0.0
    %78 = vmatpush.msra.mxu0 0.0
    %79 = vmatpush.msra.mxu0 0.0
    %80 = vmatpush.msra.mxu0 0.0
    %81 = vmatpush.msra.mxu0 0.0
    %82 = vmatpush.msra.mxu0 0.0
    %83 = vmatpush.msra.mxu0 0.0
    %84 = vmatpush.msra.mxu0 0.0
    %85 = vmatpush.msra.mxu0 0.0
    %86 = vmatpush.msra.mxu0 0.0
    %87 = vmatpush.msra.mxu0 0.0
    %88 = vmatpush.msra.mxu0 0.0
    %89 = vmatpush.msra.mxu0 0.0
    %90 = vmatpush.msra.mxu0 0.0
    %91 = vmatpush.msra.mxu0 %v43
    %92 = vmatpush.msra.mxu0 %v42
    %93 = vmatmul.f32.gmra.mxu0 %v75
    %v94 = vpop.f32.mrf.mxu0
    %v95 = vadd.f32 %v71, %v94
    %96 = vdwg.mxu0
    %v97 = vld [vmem:[%s5] sm:$0x1]
    %v99 = vperm.slane %v97, 0
    %v101 = vadd.f32 %v95, %v99
    %v102 = vld [vmem:[%s2] sm:$0xff]
    %v103 = vxor.u32 %v101, 2147483648
    %v104 = vmul.f32 %v103, 1.442695
    %v105 = vpow.pop %v104
    %v106 = vadd.f32 %v105, 1.0
    %v107 = vrcp.pop %v106
    %v108 = vmul.f32 %v106, %v107
    %v109 = vsub.f32 1.0, %v108
    %v110 = vmul.f32 %v107, %v109
    %v111 = vadd.f32 %v107, %v110
    %vm112 = vweird.f32 %v106
    %vm113 = vweird.f32 %v107
    %vm114 = vmor %vm112, %vm113
    %v115 = vsel %vm114, %v107, %v111
    %v116 = vand.u32 2147483647, %v106
    %vm117 = vcmp.eq.f32.partialorder %v116, 8.507059e+37
    %v118 = vand.u32 %v106, 2147483648
    %v119 = vor.u32 1.1754944e-38, %v118
    %v120 = vsel %vm117, %v119, %v115
    %v121 = vmul.f32 1.0, %v120
    %v122 = vtanh.pop %v101
    %v123 = vmul.f32 %v121, %v102
    %125 = vrot.lane.b32.xlu0 %v122, 64
    %v126 = vpop.permute.xlu0 %125
    %v128 = vmul.f32 %v121, %v126
    %130 = vrot.lane.b32.xlu0 %v128, 96
    %v131 = vpop.permute.xlu0 %130
    %v133 = vadd.f32 %v123, %v131
    %v134 = vtanh.pop %v133
    %136 = vrot.lane.b32.xlu0 %v134, 64
    %v137 = vpop.permute.xlu0 %136
    %v139 = vmul.f32 %v121, %v137
    %141 = vrot.lane.b32.xlu0 %v139, 64
    %v142 = vpop.permute.xlu0 %141
    %144 = vst.msk [vmem:[%s6] sm:$0xff] %vm49, %v142
    %145 = vst.msk [vmem:[%s7] sm:$0xff] %vm49, %v133
    // Predicated region
    $region30: #{unrolled_lstm_cell_forward.1} parent=1 // pred_check
      _
    $region31: #{unrolled_lstm_cell_forward.1} parent=1 // pred_check_branch
      %147 = sbr.rel (0) target = $region33
    $region32: #{unrolled_lstm_cell_forward.1} parent=1 // pred_region
      _
    $region33: #{unrolled_lstm_cell_forward.1} parent=1 // pred_fallthru
      _
    // Predicated region
    $region34: #{unrolled_lstm_cell_forward.1} parent=1 // pred_check
      _
    $region35: #{unrolled_lstm_cell_forward.1} parent=1 // pred_check_branch
      %149 = sbr.rel (0) target = $region37
    $region36: #{unrolled_lstm_cell_forward.1} parent=1 // pred_region
      _
    $region37: #{unrolled_lstm_cell_forward.1} parent=1 // pred_fallthru
      _
    // Predicated region
    $region38: #{unrolled_lstm_cell_forward.1} parent=1 // pred_check
      _
    $region39: #{unrolled_lstm_cell_forward.1} parent=1 // pred_check_branch
      %151 = sbr.rel (0) target = $region41
    $region40: #{unrolled_lstm_cell_forward.1} parent=1 // pred_region
      _
    $region41: #{unrolled_lstm_cell_forward.1} parent=1 // pred_fallthru
      _
    // Predicated region
    $region42: #{unrolled_lstm_cell_forward.1} parent=1 // pred_check
      _
    $region43: #{unrolled_lstm_cell_forward.1} parent=1 // pred_check_branch
      %153 = sbr.rel (0) target = $region45
    $region44: #{unrolled_lstm_cell_forward.1} parent=1 // pred_region
      _
    $region45: #{unrolled_lstm_cell_forward.1} parent=1 // pred_fallthru
      _
    %154 = vsyncpa [#allocation3], 1

</llo_original>
